<compile_context>
chip_gen: v7x
topology: tpu7x:2x2x1
jax: 0.10.0
libtpu: 0.0.40
codegen_flags: <defaults>
</compile_context>

<pallas_src>
import jax
import jax.numpy as jnp
from jax import lax
from jax.experimental import pallas as pl
from jax.experimental.pallas import tpu as pltpu

EPS = 1e-5


def _round_up(x, m):
    return ((x + m - 1) // m) * m


# --------------------------------------------------------------------------------------
# Kernels (feature-major: batch lives on the 128-lane axis, everything lane-dense).
# --------------------------------------------------------------------------------------

def _fm_mlp_tail(u_emb, i_emb, lin,
                 w1t_ref, b1c_ref, w2t_ref, b2c_ref, wo_ref, obias_ref):
    """Shared tail: 2-field FM cross + (BN-folded) MLP + FeaturesLinear + sigmoid.

    u_emb / i_emb: (F, TB) f32, lin: (1, TB) f32.  Returns a lane-dense (1, TB) row.
    """
    # FactorizationMachine(reduce_sum=False) over 2 fields == elementwise product (exact).
    cross = (u_emb * i_emb).astype(jnp.bfloat16)                            # (F, TB)

    # BN0/BN1 folded into w1t/b1c, BN2 folded into w2t/b2c; Dropout == identity (eval).
    h = jnp.dot(w1t_ref[...], cross, preferred_element_type=jnp.float32) + b1c_ref[...]
    h = jnp.maximum(h, 0.0).astype(jnp.bfloat16)                            # (H1, TB)
    h = jnp.dot(w2t_ref[...], h, preferred_element_type=jnp.float32) + b2c_ref[...]
    h = jnp.maximum(h, 0.0)                                                 # (H2, TB)

    # Output layer (H2 -> 1): VPU mul + sublane reduction -> lane-dense (1, TB) logit row.
    logit = jnp.sum(h * wo_ref[...], axis=0, keepdims=True)                 # (1, TB)
    return jax.nn.sigmoid(logit + obias_ref[...] + lin)


def deepfm_fused_kernel(uidx_ref, iidx_ref, table_ref,
                        w1t_ref, b1c_ref, w2t_ref, b2c_ref, wo_ref, obias_ref,
                        out_ref):
    """Small-vocab path: embedding + fc gather fused in-kernel via one-hot MXU matmuls."""
    F = table_ref.shape[0] - 1          # last table row is the FeaturesLinear fc value
    V = table_ref.shape[1]
    tb = uidx_ref.shape[1]

    table = table_ref[...]                                                  # (F+1, V) bf16
    rows = lax.broadcasted_iota(jnp.int32, (V, tb), 0)                      # (V, TB)

    onehot_u = jnp.where(rows == uidx_ref[...], 1.0, 0.0).astype(table.dtype)
    onehot_i = jnp.where(rows == iidx_ref[...], 1.0, 0.0).astype(table.dtype)
    gath_u = jnp.dot(table, onehot_u, preferred_element_type=jnp.float32)   # (F+1, TB)
    gath_i = jnp.dot(table, onehot_i, preferred_element_type=jnp.float32)   # (F+1, TB)

    lin = gath_u[F:, :] + gath_i[F:, :]                                     # (1, TB)
    out_ref[...] = _fm_mlp_tail(gath_u[:F, :], gath_i[:F, :], lin,
                                w1t_ref, b1c_ref, w2t_ref, b2c_ref, wo_ref, obias_ref)


def deepfm_stream_kernel(feat_ref,
                         w1t_ref, b1c_ref, w2t_ref, b2c_ref, wo_ref, obias_ref,
                         out_ref):
    """Large-vocab path: rows pre-gathered by XLA, streamed as one feature-major bf16 slab.

    feat rows: [0:F) = user embedding, [F:2F) = item embedding, row 2F = fc[u]+fc[i].
    """
    F = (feat_ref.shape[0] - 1) // 2
    feat = feat_ref[...].astype(jnp.float32)                                # (2F+1, TB)
    out_ref[...] = _fm_mlp_tail(feat[:F, :], feat[F:2 * F, :], feat[2 * F:, :],
                                w1t_ref, b1c_ref, w2t_ref, b2c_ref, wo_ref, obias_ref)


# --------------------------------------------------------------------------------------
# Host-side parameter folding (eval-mode BN -> Linear) and wrapper.
# --------------------------------------------------------------------------------------

def _fold_params(p):
    """Fold the three eval-mode BatchNorms into the Linear layers; pre-transpose for the
    feature-major kernel layout and cast matmul weights to bf16 (MXU-native feed)."""
    s0 = p["bn0_g"] * lax.rsqrt(p["bn0_v"] + EPS)            # (1, F)
    t0 = p["bn0_b"] - p["bn0_m"] * s0
    s1 = p["bn1_g"] * lax.rsqrt(p["bn1_v"] + EPS)            # (1, H1)
    t1 = p["bn1_b"] - p["bn1_m"] * s1
    s2 = p["bn2_g"] * lax.rsqrt(p["bn2_v"] + EPS)            # (1, H2)
    t2 = p["bn2_b"] - p["bn2_m"] * s2

    w1 = (s0.T * p["w1"]) * s1                               # (F, H1): bn0 rows, bn1 cols
    b1 = (t0 @ p["w1"] + p["b1"]) * s1 + t1                  # (1, H1)
    w2 = p["w2"] * s2                                        # (H1, H2): bn2 cols
    b2 = p["b2"] * s2 + t2                                   # (1, H2)

    w1t = w1.T.astype(jnp.bfloat16)                          # (H1, F)
    w2t = w2.T.astype(jnp.bfloat16)                          # (H2, H1)
    b1c = b1.reshape(-1, 1)                                  # (H1, 1) f32
    b2c = b2.reshape(-1, 1)                                  # (H2, 1) f32
    wo_c = p["wo"]                                           # (H2, 1) f32
    obias = p["bo"] + p["fc_bias"]                           # (1, 1): MLP bias + linear bias
    return w1t, b1c, w2t, b2c, wo_c, obias


def deepfm_forward(users_feat, items_feat, params, *, tile_b=8192, fuse_gather=None):
    """DeepFM forward: sigmoid(FeaturesLinear(x) + MLP(BN(FM(Embedding(x))))).

    tile_b: batch lanes per grid step.  8192 already amortizes the ~0.35us per-step
    pipeline overhead; raise to 16384-32768 on v6e/v7x for the streaming path (re-check
    vmem_limit_bytes, and consider pipeline_mode=pl.Buffered(3) if DMA is still exposed).
    """
    n_users = params["n_users"]
    u_idx = users_feat.reshape(-1).astype(jnp.int32)
    i_idx = items_feat.reshape(-1).astype(jnp.int32) + n_users
    B = int(u_idx.shape[0])

    emb = params["embedding"]                                # (V, F) bf16
    V, F = emb.shape
    w1t, b1c, w2t, b2c, wo_c, obias = _fold_params(params)
    H1, H2 = w1t.shape[0], w2t.shape[0]

    # Augmented feature-major table: rows 0..F-1 = embedding dims, row F = FeaturesLinear fc.
    table_t = jnp.concatenate([emb.astype(jnp.float32), params["fc"]],
                              axis=1).T.astype(jnp.bfloat16)                 # (F+1, V)

    # Batch tiling: lane-aligned tile derived from B (no full-tile over-padding); force
    # >=2 grid steps for non-tiny batches so both v7x TensorCores get work.
    nt = pl.cdiv(B, tile_b)
    if B >= 256:
        nt = max(nt, 2)
    tb = _round_up(pl.cdiv(B, nt), 128)
    b_pad = nt * tb

    V_pad = _round_up(V, 128)
    if fuse_gather is None:
        # Fuse the gather only while the (V_pad, tb) one-hot temporaries stay cheap;
        # otherwise fall back to the XLA gather + streaming kernel.
        fuse_gather = (V_pad <= 2048) and (2 * V_pad * tb * 2 <= (8 << 20))

    lane_row_spec = pl.BlockSpec((1, tb), lambda i: (0, i))   # lane-dense streamed rows

    def resident(a):                                          # VMEM-resident small arrays
        return pl.BlockSpec(a.shape, lambda i, _nd=a.ndim: (0,) * _nd)

    weights = (w1t, b1c, w2t, b2c, wo_c, obias)
    weight_specs = [resident(w) for w in weights]
    weight_bytes = sum(int(w.size) * w.dtype.itemsize for w in weights)
    mlp_flops = 2 * (F * H1 + H1 * H2 + H2 + F)

    compiler_params = pltpu.CompilerParams(
        dimension_semantics=("parallel",),
        vmem_limit_bytes=48 * 1024 * 1024,                    # headroom for larger tiles (<64MiB v7x)
    )

    if fuse_gather:
        table_p = jnp.pad(table_t, ((0, 0), (0, V_pad - V)))
        u_row = jnp.pad(u_idx, (0, b_pad - B)).reshape(1, b_pad)
        i_row = jnp.pad(i_idx, (0, b_pad - B)).reshape(1, b_pad)
        cost = pl.CostEstimate(
            flops=int(b_pad * (mlp_flops + 4 * V_pad * (F + 1))),
            transcendentals=int(b_pad),
            bytes_accessed=int(b_pad * 12 + table_p.size * 2 + weight_bytes),
        )
        out = pl.pallas_call(
            deepfm_fused_kernel,
            out_shape=jax.ShapeDtypeStruct((1, b_pad), jnp.float32),
            grid=(nt,),
            in_specs=[lane_row_spec, lane_row_spec, resident(table_p)] + weight_specs,
            out_specs=lane_row_spec,
            compiler_params=compiler_params,
            cost_estimate=cost,
        )(u_row, i_row, table_p, *weights)
    else:
        # TODO(synk): large-vocab path still gathers rows in XLA (one extra HBM pass of the
        # gathered slab); a fully fused version needs per-row DMA gather with
        # scalar-prefetched indices.
        u_rows = table_t[:, u_idx]                                          # (F+1, B)
        i_rows = table_t[:, i_idx]                                          # (F+1, B)
        feat = jnp.concatenate(
            [u_rows[:F], i_rows[:F], u_rows[F:] + i_rows[F:]], axis=0)      # (2F+1, B)
        feat = jnp.pad(feat, ((0, 0), (0, b_pad - B)))
        cost = pl.CostEstimate(
            flops=int(b_pad * mlp_flops),
            transcendentals=int(b_pad),
            bytes_accessed=int(b_pad * (feat.shape[0] * 2 + 4) + weight_bytes),
        )
        out = pl.pallas_call(
            deepfm_stream_kernel,
            out_shape=jax.ShapeDtypeStruct((1, b_pad), jnp.float32),
            grid=(nt,),
            in_specs=[pl.BlockSpec((feat.shape[0], tb), lambda i: (0, i))] + weight_specs,
            out_specs=lane_row_spec,
            compiler_params=compiler_params,
            cost_estimate=cost,
        )(feat, *weights)

    return out[0, :B]                    # torch.sigmoid(x.squeeze(1)) -> (B,)


# --------------------------------------------------------------------------------------
# Pure-JAX reference (un-folded, eval-mode) and demo parameters.
# --------------------------------------------------------------------------------------

def deepfm_reference(users_feat, items_feat, p):
    u_idx = users_feat.reshape(-1).astype(jnp.int32)
    i_idx = items_feat.reshape(-1).astype(jnp.int32) + p["n_users"]
    emb = p["embedding"].astype(jnp.float32)
    u, it = emb[u_idx], emb[i_idx]
    cross = 0.5 * ((u + it) ** 2 - u ** 2 - it ** 2)          # FM, reduce_sum=False, 2 fields

    def bn(x, g, b, m, v):
        return (x - m) * g * lax.rsqrt(v + EPS) + b

    x = bn(cross, p["bn0_g"], p["bn0_b"], p["bn0_m"], p["bn0_v"])
    x = bn(x @ p["w1"] + p["b1"], p["bn1_g"], p["bn1_b"], p["bn1_m"], p["bn1_v"])
    x = jnp.maximum(x, 0.0)
    x = bn(x @ p["w2"] + p["b2"], p["bn2_g"], p["bn2_b"], p["bn2_m"], p["bn2_v"])
    x = jnp.maximum(x, 0.0)
    mlp = x @ p["wo"] + p["bo"]                               # (B, 1)
    lin = p["fc"][u_idx] + p["fc"][i_idx] + p["fc_bias"]      # (B, 1)
    return jax.nn.sigmoid((lin + mlp)[:, 0])


def init_params(key, n_users, n_items, n_factors, mlp_dims):
    V = n_users + n_items
    H1, H2 = mlp_dims
    ks = jax.random.split(key, 12)

    def xavier(k, shape):
        fan_in, fan_out = shape
        return ((2.0 / (fan_in + fan_out)) ** 0.5) * jax.random.normal(k, shape, jnp.float32)

    def bn_stats(k, n, name, params):
        kg, kb, km, kv = jax.random.split(k, 4)
        params[f"{name}_g"] = 1.0 + 0.1 * jax.random.normal(kg, (1, n), jnp.float32)
        params[f"{name}_b"] = 0.1 * jax.random.normal(kb, (1, n), jnp.float32)
        params[f"{name}_m"] = 0.1 * jax.random.normal(km, (1, n), jnp.float32)
        params[f"{name}_v"] = jax.random.uniform(kv, (1, n), jnp.float32, 0.5, 1.5)

    params = {
        "n_users": n_users,
        # FeaturesEmbedding / FeaturesLinear tables (xavier_normal per _init_weights).
        "embedding": xavier(ks[0], (V, n_factors)).astype(jnp.bfloat16),
        "fc": xavier(ks[1], (V, 1)),
        "fc_bias": jnp.zeros((1, 1), jnp.float32),
        "w1": xavier(ks[2], (n_factors, H1)),
        "b1": 0.05 * jax.random.normal(ks[8], (1, H1), jnp.float32),
        "w2": xavier(ks[3], (H1, H2)),
        "b2": 0.05 * jax.random.normal(ks[9], (1, H2), jnp.float32),
        "wo": xavier(ks[4], (H2, 1)),
        "bo": 0.05 * jax.random.normal(ks[10], (1, 1), jnp.float32),
    }
    bn_stats(ks[5], n_factors, "bn0", params)
    bn_stats(ks[6], H1, "bn1", params)
    bn_stats(ks[7], H2, "bn2", params)
    return params


if __name__ == "__main__":
    # config = {'n_users': 50, 'n_items': 40, 'n_factors': 32,
    #           'mlp_dims': (64, 32), 'dropouts': (0.2, 0.2)}
    n_users, n_items = 50, 40
    n_factors = 32
    mlp_dims = (64, 32)
    batch = 8

    key = jax.random.PRNGKey(0)
    k_param, k_u, k_i = jax.random.split(key, 3)

    params = init_params(k_param, n_users, n_items, n_factors, mlp_dims)
    users_feat = jax.random.randint(k_u, (batch,), 0, n_users, dtype=jnp.int32)
    items_feat = jax.random.randint(k_i, (batch,), 0, n_items, dtype=jnp.int32)

    ref = deepfm_reference(users_feat, items_feat, params)

    out_fused = jax.block_until_ready(deepfm_forward(users_feat, items_feat, params))
    out_stream = jax.block_until_ready(
        deepfm_forward(users_feat, items_feat, params, fuse_gather=False))

    for out in (out_fused, out_stream):
        assert out.shape == (batch,)
        assert bool(jnp.all(jnp.isfinite(out)))
        assert bool(jnp.max(jnp.abs(out - ref)) < 2e-2)

    print("KERNEL_OK")
</pallas_src>

<mosaic_0001>
module attributes {stable_mosaic.version = 11 : i64} {
  func.func @deepfm_fused_kernel(%arg0: i32, %arg1: memref<1x128xi32, #tpu.memory_space<vmem>>, %arg2: memref<1x128xi32, #tpu.memory_space<vmem>>, %arg3: memref<33x128xbf16, #tpu.memory_space<vmem>>, %arg4: memref<64x32xbf16, #tpu.memory_space<vmem>>, %arg5: memref<64x1xf32, #tpu.memory_space<vmem>>, %arg6: memref<32x64xbf16, #tpu.memory_space<vmem>>, %arg7: memref<32x1xf32, #tpu.memory_space<vmem>>, %arg8: memref<32x1xf32, #tpu.memory_space<vmem>>, %arg9: memref<1x1xf32, #tpu.memory_space<vmem>>, %arg10: memref<1x128xf32, #tpu.memory_space<vmem>>) attributes {dimension_semantics = [#tpu.dimension_semantics<parallel>], iteration_bounds = array<i64: 1>, scalar_prefetch = 0 : i64, scratch_operands = 0 : i64, tpu.core_type = #tpu.core_type<tc>, window_params = [{transform_indices = @transform_0, window_bounds = array<i64: 1, 128>}, {transform_indices = @transform_1, window_bounds = array<i64: 1, 128>}, {pipeline_mode = #tpu.pipeline_mode<synchronous>, transform_indices = @transform_2, window_bounds = array<i64: 33, 128>}, {pipeline_mode = #tpu.pipeline_mode<synchronous>, transform_indices = @transform_3, window_bounds = array<i64: 64, 32>}, {pipeline_mode = #tpu.pipeline_mode<synchronous>, transform_indices = @transform_4, window_bounds = array<i64: 64, 1>}, {pipeline_mode = #tpu.pipeline_mode<synchronous>, transform_indices = @transform_5, window_bounds = array<i64: 32, 64>}, {pipeline_mode = #tpu.pipeline_mode<synchronous>, transform_indices = @transform_6, window_bounds = array<i64: 32, 1>}, {pipeline_mode = #tpu.pipeline_mode<synchronous>, transform_indices = @transform_7, window_bounds = array<i64: 32, 1>}, {pipeline_mode = #tpu.pipeline_mode<synchronous>, transform_indices = @transform_8, window_bounds = array<i64: 1, 1>}, {transform_indices = @transform_9, window_bounds = array<i64: 1, 128>}]} {
    %c0 = arith.constant 0 : index
    %c0_0 = arith.constant 0 : index
    %0 = vector.load %arg3[%c0, %c0_0] : memref<33x128xbf16, #tpu.memory_space<vmem>>, vector<33x128xbf16>
    %1 = tpu.iota {dimensions = array<i32: 0>} : vector<128x128xi32>
    %c0_1 = arith.constant 0 : index
    %c0_2 = arith.constant 0 : index
    %2 = vector.load %arg1[%c0_1, %c0_2] : memref<1x128xi32, #tpu.memory_space<vmem>>, vector<1x128xi32>
    %3 = vector.broadcast %2 : vector<1x128xi32> to vector<128x128xi32>
    %4 = arith.cmpi eq, %1, %3 : vector<128x128xi32>
    %cst = arith.constant 1.000000e+00 : f32
    %cst_3 = arith.constant 0.000000e+00 : f32
    %5 = vector.broadcast %cst : f32 to vector<128x128xf32>
    %6 = vector.broadcast %cst_3 : f32 to vector<128x128xf32>
    %7 = arith.select %4, %5, %6 : vector<128x128xi1>, vector<128x128xf32>
    %8 = arith.truncf %7 : vector<128x128xf32> to vector<128x128xbf16>
    %c0_4 = arith.constant 0 : index
    %c0_5 = arith.constant 0 : index
    %9 = vector.load %arg2[%c0_4, %c0_5] : memref<1x128xi32, #tpu.memory_space<vmem>>, vector<1x128xi32>
    %10 = vector.broadcast %9 : vector<1x128xi32> to vector<128x128xi32>
    %11 = arith.cmpi eq, %1, %10 : vector<128x128xi32>
    %cst_6 = arith.constant 1.000000e+00 : f32
    %cst_7 = arith.constant 0.000000e+00 : f32
    %12 = vector.broadcast %cst_6 : f32 to vector<128x128xf32>
    %13 = vector.broadcast %cst_7 : f32 to vector<128x128xf32>
    %14 = arith.select %11, %12, %13 : vector<128x128xi1>, vector<128x128xf32>
    %15 = arith.truncf %14 : vector<128x128xf32> to vector<128x128xbf16>
    %cst_8 = arith.constant dense<0.000000e+00> : vector<33x128xf32>
    %16 = tpu.matmul %0, %8, %cst_8 {dimension_numbers = #tpu.dot_dimension_numbers<[1], [0], [0], [1], [0, 0, 1, 1], [], []>} : vector<33x128xbf16>, vector<128x128xbf16>, vector<33x128xf32> -> vector<33x128xf32>
    %cst_9 = arith.constant dense<0.000000e+00> : vector<33x128xf32>
    %17 = tpu.matmul %0, %15, %cst_9 {dimension_numbers = #tpu.dot_dimension_numbers<[1], [0], [0], [1], [0, 0, 1, 1], [], []>} : vector<33x128xbf16>, vector<128x128xbf16>, vector<33x128xf32> -> vector<33x128xf32>
    %18 = vector.extract_strided_slice %16 {offsets = [32, 0], sizes = [1, 128], strides = [1, 1]} : vector<33x128xf32> to vector<1x128xf32>
    %19 = vector.extract_strided_slice %17 {offsets = [32, 0], sizes = [1, 128], strides = [1, 1]} : vector<33x128xf32> to vector<1x128xf32>
    %20 = arith.addf %18, %19 : vector<1x128xf32>
    %21 = vector.extract_strided_slice %16 {offsets = [0, 0], sizes = [32, 128], strides = [1, 1]} : vector<33x128xf32> to vector<32x128xf32>
    %22 = vector.extract_strided_slice %17 {offsets = [0, 0], sizes = [32, 128], strides = [1, 1]} : vector<33x128xf32> to vector<32x128xf32>
    %23 = arith.mulf %21, %22 : vector<32x128xf32>
    %24 = arith.truncf %23 : vector<32x128xf32> to vector<32x128xbf16>
    %c0_10 = arith.constant 0 : index
    %c0_11 = arith.constant 0 : index
    %25 = vector.load %arg4[%c0_10, %c0_11] : memref<64x32xbf16, #tpu.memory_space<vmem>>, vector<64x32xbf16>
    %cst_12 = arith.constant dense<0.000000e+00> : vector<64x128xf32>
    %26 = tpu.matmul %25, %24, %cst_12 {dimension_numbers = #tpu.dot_dimension_numbers<[1], [0], [0], [1], [0, 0, 1, 1], [], []>} : vector<64x32xbf16>, vector<32x128xbf16>, vector<64x128xf32> -> vector<64x128xf32>
    %c0_13 = arith.constant 0 : index
    %c0_14 = arith.constant 0 : index
    %27 = vector.load %arg5[%c0_13, %c0_14] : memref<64x1xf32, #tpu.memory_space<vmem>>, vector<64x1xf32>
    %28 = vector.broadcast %27 : vector<64x1xf32> to vector<64x128xf32>
    %29 = arith.addf %26, %28 : vector<64x128xf32>
    %cst_15 = arith.constant 0.000000e+00 : f32
    %30 = vector.broadcast %cst_15 : f32 to vector<64x128xf32>
    %31 = arith.maximumf %29, %30 : vector<64x128xf32>
    %32 = arith.truncf %31 : vector<64x128xf32> to vector<64x128xbf16>
    %c0_16 = arith.constant 0 : index
    %c0_17 = arith.constant 0 : index
    %33 = vector.load %arg6[%c0_16, %c0_17] : memref<32x64xbf16, #tpu.memory_space<vmem>>, vector<32x64xbf16>
    %cst_18 = arith.constant dense<0.000000e+00> : vector<32x128xf32>
    %34 = tpu.matmul %33, %32, %cst_18 {dimension_numbers = #tpu.dot_dimension_numbers<[1], [0], [0], [1], [0, 0, 1, 1], [], []>} : vector<32x64xbf16>, vector<64x128xbf16>, vector<32x128xf32> -> vector<32x128xf32>
    %c0_19 = arith.constant 0 : index
    %c0_20 = arith.constant 0 : index
    %35 = vector.load %arg7[%c0_19, %c0_20] : memref<32x1xf32, #tpu.memory_space<vmem>>, vector<32x1xf32>
    %36 = vector.broadcast %35 : vector<32x1xf32> to vector<32x128xf32>
    %37 = arith.addf %34, %36 : vector<32x128xf32>
    %cst_21 = arith.constant 0.000000e+00 : f32
    %38 = vector.broadcast %cst_21 : f32 to vector<32x128xf32>
    %39 = arith.maximumf %37, %38 : vector<32x128xf32>
    %c0_22 = arith.constant 0 : index
    %c0_23 = arith.constant 0 : index
    %40 = vector.load %arg8[%c0_22, %c0_23] : memref<32x1xf32, #tpu.memory_space<vmem>>, vector<32x1xf32>
    %41 = vector.broadcast %40 : vector<32x1xf32> to vector<32x128xf32>
    %42 = arith.mulf %39, %41 : vector<32x128xf32>
    %cst_24 = arith.constant dense<0.000000e+00> : vector<128xf32>
    %43 = vector.multi_reduction <add>, %42, %cst_24 [0] : vector<32x128xf32> to vector<128xf32>
    %44 = vector.shape_cast %43 : vector<128xf32> to vector<1x128xf32>
    %c0_25 = arith.constant 0 : index
    %c0_26 = arith.constant 0 : index
    %45 = vector.load %arg9[%c0_25, %c0_26] : memref<1x1xf32, #tpu.memory_space<vmem>>, vector<1x1xf32>
    %46 = vector.broadcast %45 : vector<1x1xf32> to vector<1x128xf32>
    %47 = arith.addf %44, %46 : vector<1x128xf32>
    %48 = arith.addf %47, %20 : vector<1x128xf32>
    %49 = arith.negf %48 : vector<1x128xf32>
    %50 = math.exp %49 : vector<1x128xf32>
    %cst_27 = arith.constant 1.000000e+00 : f32
    %51 = vector.broadcast %cst_27 : f32 to vector<1x128xf32>
    %52 = arith.addf %51, %50 : vector<1x128xf32>
    %53 = arith.divf %51, %52 : vector<1x128xf32>
    %c0_28 = arith.constant 0 : index
    %c0_29 = arith.constant 0 : index
    %54 = vector.load %arg10[%c0_28, %c0_29] : memref<1x128xf32, #tpu.memory_space<vmem>>, vector<1x128xf32>
    tpu.vector_store %arg10[%c0_28, %c0_29], %53 {strides = array<i32>} : memref<1x128xf32, #tpu.memory_space<vmem>>, vector<1x128xf32>,
    return
  }
  func.func @transform_0(%arg0: i32) -> (i32, i32) {
    %c0_i32 = arith.constant 0 : i32
    %c0_i32_0 = arith.constant 0 : i32
    return %c0_i32, %arg0 : i32, i32
  }
  func.func @transform_1(%arg0: i32) -> (i32, i32) {
    %c0_i32 = arith.constant 0 : i32
    %c0_i32_0 = arith.constant 0 : i32
    return %c0_i32, %arg0 : i32, i32
  }
  func.func @transform_2(%arg0: i32) -> (i32, i32) {
    %c0_i32 = arith.constant 0 : i32
    %c0_i32_0 = arith.constant 0 : i32
    %c0_i32_1 = arith.constant 0 : i32
    return %c0_i32, %c0_i32_0 : i32, i32
  }
  func.func @transform_3(%arg0: i32) -> (i32, i32) {
    %c0_i32 = arith.constant 0 : i32
    %c0_i32_0 = arith.constant 0 : i32
    %c0_i32_1 = arith.constant 0 : i32
    return %c0_i32, %c0_i32_0 : i32, i32
  }
  func.func @transform_4(%arg0: i32) -> (i32, i32) {
    %c0_i32 = arith.constant 0 : i32
    %c0_i32_0 = arith.constant 0 : i32
    %c0_i32_1 = arith.constant 0 : i32
    return %c0_i32, %c0_i32_0 : i32, i32
  }
  func.func @transform_5(%arg0: i32) -> (i32, i32) {
    %c0_i32 = arith.constant 0 : i32
    %c0_i32_0 = arith.constant 0 : i32
    %c0_i32_1 = arith.constant 0 : i32
    return %c0_i32, %c0_i32_0 : i32, i32
  }
  func.func @transform_6(%arg0: i32) -> (i32, i32) {
    %c0_i32 = arith.constant 0 : i32
    %c0_i32_0 = arith.constant 0 : i32
    %c0_i32_1 = arith.constant 0 : i32
    return %c0_i32, %c0_i32_0 : i32, i32
  }
  func.func @transform_7(%arg0: i32) -> (i32, i32) {
    %c0_i32 = arith.constant 0 : i32
    %c0_i32_0 = arith.constant 0 : i32
    %c0_i32_1 = arith.constant 0 : i32
    return %c0_i32, %c0_i32_0 : i32, i32
  }
  func.func @transform_8(%arg0: i32) -> (i32, i32) {
    %c0_i32 = arith.constant 0 : i32
    %c0_i32_0 = arith.constant 0 : i32
    %c0_i32_1 = arith.constant 0 : i32
    return %c0_i32, %c0_i32_0 : i32, i32
  }
  func.func @transform_9(%arg0: i32) -> (i32, i32) {
    %c0_i32 = arith.constant 0 : i32
    %c0_i32_0 = arith.constant 0 : i32
    return %c0_i32, %arg0 : i32, i32
  }
}

</mosaic_0001>

<llo_original>
// kernel: tpu_custom_call.1
$region0: #{tpu_custom_call.1}
  #allocation0 [shape = 'u32[]', space=smem, size = 0x4, offset = 0x4, fixed_abs, tag = 'smem constant byte address 0x4 - core index']
  #allocation1 [shape = 'u32[144,128]{1,0:T(1,128)}', space=vmem, size = 0x12000, scoped, tag = 'internal scratch']
  #allocation2 [shape = 'f32[1,1]{1,0:T(1,128)S(1)}', space=vmem, size = 0x200, scoped, tag = 'scoped memory for tpu_custom_call.1']
  %s0 = inlined_call_operand.vmem [shape: s32[1,128], index: 0, kind: input, shape index: {}]
  %s1 = inlined_call_operand.vmem [shape: s32[1,128], index: 1, kind: input, shape index: {}]
  %s2 = inlined_call_operand.vmem [shape: bf16[33,128], index: 2, kind: input, shape index: {}]
  %s3 = inlined_call_operand.vmem [shape: bf16[64,32], index: 3, kind: input, shape index: {}]
  %s4 = inlined_call_operand.vmem [shape: f32[64,1], index: 4, kind: input, shape index: {}]
  %s5 = inlined_call_operand.vmem [shape: bf16[32,64], index: 5, kind: input, shape index: {}]
  %s6 = inlined_call_operand.vmem [shape: f32[32,1], index: 6, kind: input, shape index: {}]
  %s7 = inlined_call_operand.vmem [shape: f32[32,1], index: 7, kind: input, shape index: {}]
  %s8 = inlined_call_operand.<no memory space> [shape: f32[1,1], index: 8, kind: input, shape index: {}]
  %s9 = inlined_call_operand.hbm [shape: f32[1,128], index: 9, kind: output, shape index: {}]
  %s10 = sld [smem:[#allocation0]]
  $region46: #{tpu_custom_call.1} parent=0
    _
  %s12 = ssub.s32 1, %s10
  %s13 = scalar_select 0, %s12, %s10
  %v14 = vstv %s8
  %15 = vst [vmem:[#allocation2] sm:$0x1] %v14
  $region1: #{tpu_custom_call.1} parent=0
    #allocation3 [shape = 'u8[512]{0}', space=vmem, size = 0x400, scoped, tag = 'output window, operand 0, single buffered']
    #allocation4 [shape = 's32[1]{0}', space=sflag, size = 0x4, scoped, tag = 'scoped memory for tpu_custom_call.1']
    %16 = vsyncpa [#allocation4], 0
    // Predicated region
    $region2: #{tpu_custom_call.1} parent=1 // pred_check
      _
    $region3: #{tpu_custom_call.1} parent=1 // pred_check_branch
      %18 = sbr.rel (0) target = $region5
    $region4: #{tpu_custom_call.1} parent=1 // pred_region
      _
    $region5: #{tpu_custom_call.1} parent=1 // pred_fallthru
      _
    // Predicated region
    $region6: #{tpu_custom_call.1} parent=1 // pred_check
      _
    $region7: #{tpu_custom_call.1} parent=1 // pred_check_branch
      %20 = sbr.rel (0) target = $region9
    $region8: #{tpu_custom_call.1} parent=1 // pred_region
      _
    $region9: #{tpu_custom_call.1} parent=1 // pred_fallthru
      _
    // Predicated region
    $region10: #{tpu_custom_call.1} parent=1 // pred_check
      _
    $region11: #{tpu_custom_call.1} parent=1 // pred_check_branch
      %22 = sbr.rel (0) target = $region13
    $region12: #{tpu_custom_call.1} parent=1 // pred_region
      _
    $region13: #{tpu_custom_call.1} parent=1 // pred_fallthru
      _
    // Predicated region
    $region14: #{tpu_custom_call.1} parent=1 // pred_check
      _
    $region15: #{tpu_custom_call.1} parent=1 // pred_check_branch
      %24 = sbr.rel (0) target = $region17
    $region16: #{tpu_custom_call.1} parent=1 // pred_region
      _
    $region17: #{tpu_custom_call.1} parent=1 // pred_fallthru
      _
    // Predicated region
    $region18: #{tpu_custom_call.1} parent=1 // pred_check
      _
    $region19: #{tpu_custom_call.1} parent=1 // pred_check_branch
      %26 = sbr.rel (0) target = $region21
    $region20: #{tpu_custom_call.1} parent=1 // pred_region
      _
    $region21: #{tpu_custom_call.1} parent=1 // pred_fallthru
      _
    // Predicated region
    $region22: #{tpu_custom_call.1} parent=1 // pred_check
      _
    $region23: #{tpu_custom_call.1} parent=1 // pred_check_branch
      %28 = sbr.rel (0) target = $region25
    $region24: #{tpu_custom_call.1} parent=1 // pred_region
      _
    $region25: #{tpu_custom_call.1} parent=1 // pred_fallthru
      _
    // Predicated region
    $region26: #{tpu_custom_call.1} parent=1 // pred_check
      _
    $region27: #{tpu_custom_call.1} parent=1 // pred_check_branch
      %30 = sbr.rel (0) target = $region29
    $region28: #{tpu_custom_call.1} parent=1 // pred_region
      _
    $region29: #{tpu_custom_call.1} parent=1 // pred_fallthru
      _
    // Predicated region
    $region30: #{tpu_custom_call.1} parent=1 // pred_check
      _
    $region31: #{tpu_custom_call.1} parent=1 // pred_check_branch
      %32 = sbr.rel (0) target = $region33
    $region32: #{tpu_custom_call.1} parent=1 // pred_region
      _
    $region33: #{tpu_custom_call.1} parent=1 // pred_fallthru
      _
    // Predicated region
    $region34: #{tpu_custom_call.1} parent=1 // pred_check
      _
    $region35: #{tpu_custom_call.1} parent=1 // pred_check_branch
      %34 = sbr.rel (0) target = $region37
    $region36: #{tpu_custom_call.1} parent=1 // pred_region
      _
    $region37: #{tpu_custom_call.1} parent=1 // pred_fallthru
      _
    %v36 = vld [vmem:[%s2] sm:$0xf]
    %v37 = vld [vmem:[%s2 + $0x4] sm:$0xf]
    %v38 = vld [vmem:[%s2 + $0x8] sm:$0xf]
    %v39 = vld [vmem:[%s2 + $0xc] sm:$0xf]
    %v40 = vld [vmem:[%s2 + $0x10] sm:$0x1]
    %v41 = vlaneseq
    %v42 = vshrl.u32 %v41, 7
    %v43 = vadd.s32 %v42, 8
    %v44 = vadd.s32 %v42, 16
    %v45 = vadd.s32 %v42, 24
    %v46 = vadd.s32 %v42, 32
    %v47 = vadd.s32 %v42, 40
    %v48 = vadd.s32 %v42, 48
    %v49 = vadd.s32 %v42, 56
    %v50 = vadd.s32 %v42, 64
    %v51 = vadd.s32 %v42, 72
    %v52 = vadd.s32 %v42, 80
    %v53 = vadd.s32 %v42, 88
    %v54 = vadd.s32 %v42, 96
    %v55 = vadd.s32 %v42, 104
    %v56 = vadd.s32 %v42, 112
    %v57 = vadd.s32 %v42, 120
    %v58 = vld [vmem:[%s0] sm:$0x1]
    %v59 = vlaneseq
    %v60 = vshrl.u32 %v59, 7
    %v61 = vsub.s32 0, %v60
    %v62 = vrot.slane %v58, %v61
    %vm63 = vcmp.eq.s32.totalorder %v42, %v62
    %vm64 = vcmp.eq.s32.totalorder %v43, %v62
    %vm65 = vcmp.eq.s32.totalorder %v44, %v62
    %vm66 = vcmp.eq.s32.totalorder %v45, %v62
    %vm67 = vcmp.eq.s32.totalorder %v46, %v62
    %vm68 = vcmp.eq.s32.totalorder %v47, %v62
    %vm69 = vcmp.eq.s32.totalorder %v48, %v62
    %vm70 = vcmp.eq.s32.totalorder %v49, %v62
    %vm71 = vcmp.eq.s32.totalorder %v50, %v62
    %vm72 = vcmp.eq.s32.totalorder %v51, %v62
    %vm73 = vcmp.eq.s32.totalorder %v52, %v62
    %vm74 = vcmp.eq.s32.totalorder %v53, %v62
    %vm75 = vcmp.eq.s32.totalorder %v54, %v62
    %vm76 = vcmp.eq.s32.totalorder %v55, %v62
    %vm77 = vcmp.eq.s32.totalorder %v56, %v62
    %vm78 = vcmp.eq.s32.totalorder %v57, %v62
    %v79 = vsel %vm63, 1.0, 0.0
    %v80 = vsel %vm64, 1.0, 0.0
    %v81 = vsel %vm65, 1.0, 0.0
    %v82 = vsel %vm66, 1.0, 0.0
    %v83 = vsel %vm67, 1.0, 0.0
    %v84 = vsel %vm68, 1.0, 0.0
    %v85 = vsel %vm69, 1.0, 0.0
    %v86 = vsel %vm70, 1.0, 0.0
    %v87 = vsel %vm71, 1.0, 0.0
    %v88 = vsel %vm72, 1.0, 0.0
    %v89 = vsel %vm73, 1.0, 0.0
    %v90 = vsel %vm74, 1.0, 0.0
    %v91 = vsel %vm75, 1.0, 0.0
    %v92 = vsel %vm76, 1.0, 0.0
    %v93 = vsel %vm77, 1.0, 0.0
    %v94 = vsel %vm78, 1.0, 0.0
    %v95 = vpack.c.bf16 %v80, %v79
    %v96 = vpack.c.bf16 %v82, %v81
    %v97 = vpack.c.bf16 %v84, %v83
    %v98 = vpack.c.bf16 %v86, %v85
    %v99 = vpack.c.bf16 %v88, %v87
    %v100 = vpack.c.bf16 %v90, %v89
    %v101 = vpack.c.bf16 %v92, %v91
    %v102 = vpack.c.bf16 %v94, %v93
    %v103 = vld [vmem:[%s1] sm:$0x1]
    %v104 = vlaneseq
    %v105 = vshrl.u32 %v104, 7
    %v106 = vsub.s32 0, %v105
    %v107 = vrot.slane %v103, %v106
    %vm108 = vcmp.eq.s32.totalorder %v42, %v107
    %vm109 = vcmp.eq.s32.totalorder %v43, %v107
    %vm110 = vcmp.eq.s32.totalorder %v44, %v107
    %vm111 = vcmp.eq.s32.totalorder %v45, %v107
    %vm112 = vcmp.eq.s32.totalorder %v46, %v107
    %vm113 = vcmp.eq.s32.totalorder %v47, %v107
    %vm114 = vcmp.eq.s32.totalorder %v48, %v107
    %vm115 = vcmp.eq.s32.totalorder %v49, %v107
    %vm116 = vcmp.eq.s32.totalorder %v50, %v107
    %vm117 = vcmp.eq.s32.totalorder %v51, %v107
    %vm118 = vcmp.eq.s32.totalorder %v52, %v107
    %vm119 = vcmp.eq.s32.totalorder %v53, %v107
    %vm120 = vcmp.eq.s32.totalorder %v54, %v107
    %vm121 = vcmp.eq.s32.totalorder %v55, %v107
    %vm122 = vcmp.eq.s32.totalorder %v56, %v107
    %vm123 = vcmp.eq.s32.totalorder %v57, %v107
    %v124 = vsel %vm108, 1.0, 0.0
    %v125 = vsel %vm109, 1.0, 0.0
    %v126 = vsel %vm110, 1.0, 0.0
    %v127 = vsel %vm111, 1.0, 0.0
    %v128 = vsel %vm112, 1.0, 0.0
    %v129 = vsel %vm113, 1.0, 0.0
    %v130 = vsel %vm114, 1.0, 0.0
    %v131 = vsel %vm115, 1.0, 0.0
    %v132 = vsel %vm116, 1.0, 0.0
    %v133 = vsel %vm117, 1.0, 0.0
    %v134 = vsel %vm118, 1.0, 0.0
    %v135 = vsel %vm119, 1.0, 0.0
    %v136 = vsel %vm120, 1.0, 0.0
    %v137 = vsel %vm121, 1.0, 0.0
    %v138 = vsel %vm122, 1.0, 0.0
    %v139 = vsel %vm123, 1.0, 0.0
    %v140 = vpack.c.bf16 %v125, %v124
    %v141 = vpack.c.bf16 %v127, %v126
    %v142 = vpack.c.bf16 %v129, %v128
    %v143 = vpack.c.bf16 %v131, %v130
    %v144 = vpack.c.bf16 %v133, %v132
    %v145 = vpack.c.bf16 %v135, %v134
    %v146 = vpack.c.bf16 %v137, %v136
    %v147 = vpack.c.bf16 %v139, %v138
    %v153 = vunpack.c.l.b16 %v36
    %v154 = vunpack.c.l.b16 %v37
    %v155 = vunpack.c.l.b16 %v38
    %v156 = vunpack.c.l.b16 %v39
    %v157 = vunpack.c.l.b16 %v40
    %v158 = vpack.c.b16 %v154, %v153
    %v159 = vpack.c.b16 %v156, %v155
    %v160 = vpack.c.b16 %v157, %v157
    %164 = vmatprep.subr.bf16.mxu0 0
    %165 = vmatpush1.bf16.msra.mxu0 %v95
    %166 = vmatprep.subr.bf16.mxu0 0
    %167 = vmatpush1.bf16.msra.mxu0 %v96
    %168 = vmatprep.subr.bf16.mxu0 0
    %169 = vmatpush1.bf16.msra.mxu0 %v97
    %170 = vmatprep.subr.bf16.mxu0 0
    %171 = vmatpush1.bf16.msra.mxu0 %v98
    %172 = vmatprep.subr.bf16.mxu0 0
    %173 = vmatpush1.bf16.msra.mxu0 %v99
    %174 = vmatprep.subr.bf16.mxu0 0
    %175 = vmatpush1.bf16.msra.mxu0 %v100
    %176 = vmatprep.subr.bf16.mxu0 0
    %177 = vmatpush1.bf16.msra.mxu0 %v101
    %178 = vmatprep.subr.bf16.mxu0 0
    %179 = vmatpush1.bf16.msra.mxu0 %v102
    %180 = vmatprep.subr.bf16.mxu0 0
    %181 = vmatpush1.bf16.msra.mxu0 0
    %182 = vmatprep.subr.bf16.mxu0 0
    %183 = vmatpush1.bf16.msra.mxu0 0
    %184 = vmatprep.subr.bf16.mxu0 0
    %185 = vmatpush1.bf16.msra.mxu0 0
    %186 = vmatprep.subr.bf16.mxu0 0
    %187 = vmatpush1.bf16.msra.mxu0 0
    %188 = vmatprep.subr.bf16.mxu0 0
    %189 = vmatpush1.bf16.msra.mxu0 0
    %190 = vmatprep.subr.bf16.mxu0 0
    %191 = vmatpush1.bf16.msra.mxu0 0
    %192 = vmatprep.subr.bf16.mxu0 0
    %193 = vmatpush1.bf16.msra.mxu0 0
    %194 = vmatprep.subr.bf16.mxu0 0
    %195 = vmatpush1.bf16.msra.mxu0 0
    %196 = vmatprep.mubr.bf16.mxu0 0
    %197 = vmatmul.mubr.bf16.gmra.mrb[0].mxu0 %v158
    %v198 = vpop.f32.mrb[0].mxu0
    %v199 = vadd.f32 0.0, %v198
    %v200 = vpop.f32.mrb[0].mxu0
    %v201 = vpop.f32.mrb[0].mxu0
    %v202 = vadd.f32 0.0, %v201
    %v203 = vpop.f32.mrb[0].mxu0
    %204 = vmatprep.mubr.bf16.mxu0 0
    %205 = vmatmul.mubr.bf16.gmra.mrb[0].mxu0 %v159
    %v206 = vpop.f32.mrb[0].mxu0
    %v207 = vadd.f32 0.0, %v206
    %v208 = vpop.f32.mrb[0].mxu0
    %v209 = vpop.f32.mrb[0].mxu0
    %v210 = vadd.f32 0.0, %v209
    %v211 = vpop.f32.mrb[0].mxu0
    %212 = vmatprep.mubr.bf16.mxu0 0
    %213 = vmatmul.mubr.bf16.gmra.mrb[0].mxu0 %v160
    %v214 = vpop.f32.mrb[0].mxu0
    %v215 = vadd.f32 0.0, %v214
    %v216 = vpop.f32.mrb[0].mxu0
    %v217 = vpop.f32.mrb[0].mxu0
    %v218 = vpop.f32.mrb[0].mxu0
    %219 = vdwg.mxu0
    %220 = vmatprep.subr.bf16.mxu0 0
    %221 = vmatpush1.bf16.msra.mxu0 %v140
    %222 = vmatprep.subr.bf16.mxu0 0
    %223 = vmatpush1.bf16.msra.mxu0 %v141
    %224 = vmatprep.subr.bf16.mxu0 0
    %225 = vmatpush1.bf16.msra.mxu0 %v142
    %226 = vmatprep.subr.bf16.mxu0 0
    %227 = vmatpush1.bf16.msra.mxu0 %v143
    %228 = vmatprep.subr.bf16.mxu0 0
    %229 = vmatpush1.bf16.msra.mxu0 %v144
    %230 = vmatprep.subr.bf16.mxu0 0
    %231 = vmatpush1.bf16.msra.mxu0 %v145
    %232 = vmatprep.subr.bf16.mxu0 0
    %233 = vmatpush1.bf16.msra.mxu0 %v146
    %234 = vmatprep.subr.bf16.mxu0 0
    %235 = vmatpush1.bf16.msra.mxu0 %v147
    %236 = vmatprep.subr.bf16.mxu0 0
    %237 = vmatpush1.bf16.msra.mxu0 0
    %238 = vmatprep.subr.bf16.mxu0 0
    %239 = vmatpush1.bf16.msra.mxu0 0
    %240 = vmatprep.subr.bf16.mxu0 0
    %241 = vmatpush1.bf16.msra.mxu0 0
    %242 = vmatprep.subr.bf16.mxu0 0
    %243 = vmatpush1.bf16.msra.mxu0 0
    %244 = vmatprep.subr.bf16.mxu0 0
    %245 = vmatpush1.bf16.msra.mxu0 0
    %246 = vmatprep.subr.bf16.mxu0 0
    %247 = vmatpush1.bf16.msra.mxu0 0
    %248 = vmatprep.subr.bf16.mxu0 0
    %249 = vmatpush1.bf16.msra.mxu0 0
    %250 = vmatprep.subr.bf16.mxu0 0
    %251 = vmatpush1.bf16.msra.mxu0 0
    %252 = vmatprep.mubr.bf16.mxu0 0
    %253 = vmatmul.mubr.bf16.gmra.mrb[0].mxu0 %v158
    %v254 = vpop.f32.mrb[0].mxu0
    %v255 = vadd.f32 0.0, %v254
    %v256 = vpop.f32.mrb[0].mxu0
    %v257 = vpop.f32.mrb[0].mxu0
    %v258 = vadd.f32 0.0, %v257
    %v259 = vpop.f32.mrb[0].mxu0
    %260 = vmatprep.mubr.bf16.mxu0 0
    %261 = vmatmul.mubr.bf16.gmra.mrb[0].mxu0 %v159
    %v262 = vpop.f32.mrb[0].mxu0
    %v263 = vadd.f32 0.0, %v262
    %v264 = vpop.f32.mrb[0].mxu0
    %v265 = vpop.f32.mrb[0].mxu0
    %v266 = vadd.f32 0.0, %v265
    %v267 = vpop.f32.mrb[0].mxu0
    %268 = vmatprep.mubr.bf16.mxu0 0
    %269 = vmatmul.mubr.bf16.gmra.mrb[0].mxu0 %v160
    %v270 = vpop.f32.mrb[0].mxu0
    %v271 = vadd.f32 0.0, %v270
    %v272 = vpop.f32.mrb[0].mxu0
    %v273 = vpop.f32.mrb[0].mxu0
    %v274 = vpop.f32.mrb[0].mxu0
    %275 = vdwg.mxu0
    %v276 = vadd.f32 %v215, %v271
    %v277 = vmul.f32 %v199, %v255
    %v278 = vmul.f32 %v202, %v258
    %v279 = vmul.f32 %v207, %v263
    %v280 = vmul.f32 %v210, %v266
    %v281 = vpack.c.bf16 %v278, %v277
    %v282 = vpack.c.bf16 %v280, %v279
    %v283 = vld [vmem:[%s3] sm:$0xf]
    %v284 = vld [vmem:[%s3 + $0x4] sm:$0xf]
    %v285 = vld [vmem:[%s3 + $0x8] sm:$0xf]
    %v286 = vld [vmem:[%s3 + $0xc] sm:$0xf]
    %v287 = vld [vmem:[%s3 + $0x10] sm:$0xf]
    %v288 = vld [vmem:[%s3 + $0x14] sm:$0xf]
    %v289 = vld [vmem:[%s3 + $0x18] sm:$0xf]
    %v290 = vld [vmem:[%s3 + $0x1c] sm:$0xf]
    %v291 = vld [vmem:[%s4] sm:$0xff]
    %v292 = vld [vmem:[%s4 + $0x8] sm:$0xff]
    %v293 = vld [vmem:[%s4 + $0x10] sm:$0xff]
    %v294 = vld [vmem:[%s4 + $0x18] sm:$0xff]
    %v295 = vld [vmem:[%s4 + $0x20] sm:$0xff]
    %v296 = vld [vmem:[%s4 + $0x28] sm:$0xff]
    %v297 = vld [vmem:[%s4 + $0x30] sm:$0xff]
    %v298 = vld [vmem:[%s4 + $0x38] sm:$0xff]
    %300 = vset.pattern.permute.xlu0 0
    %301 = vperm.xlu0 %300, %v291
    %v302 = vpop.permute.xlu0 %301
    %305 = vset.pattern.permute.xlu0 0
    %306 = vperm.xlu0 %305, %v292
    %v307 = vpop.permute.xlu0 %306
    %310 = vset.pattern.permute.xlu0 0
    %311 = vperm.xlu0 %310, %v293
    %v312 = vpop.permute.xlu0 %311
    %315 = vset.pattern.permute.xlu0 0
    %316 = vperm.xlu0 %315, %v294
    %v317 = vpop.permute.xlu0 %316
    %320 = vset.pattern.permute.xlu0 0
    %321 = vperm.xlu0 %320, %v295
    %v322 = vpop.permute.xlu0 %321
    %325 = vset.pattern.permute.xlu0 0
    %326 = vperm.xlu0 %325, %v296
    %v327 = vpop.permute.xlu0 %326
    %330 = vset.pattern.permute.xlu0 0
    %331 = vperm.xlu0 %330, %v297
    %v332 = vpop.permute.xlu0 %331
    %335 = vset.pattern.permute.xlu0 0
    %336 = vperm.xlu0 %335, %v298
    %v337 = vpop.permute.xlu0 %336
    %v347 = vunpack.c.l.b16 %v283
    %v348 = vunpack.c.l.b16 %v284
    %v349 = vunpack.c.l.b16 %v285
    %v350 = vunpack.c.l.b16 %v286
    %v351 = vunpack.c.l.b16 %v287
    %v352 = vunpack.c.l.b16 %v288
    %v353 = vunpack.c.l.b16 %v289
    %v354 = vunpack.c.l.b16 %v290
    %v355 = vpack.c.b16 %v348, %v347
    %v356 = vpack.c.b16 %v350, %v349
    %v357 = vpack.c.b16 %v352, %v351
    %v358 = vpack.c.b16 %v354, %v353
    %vm359 = vcmask 261120
    %v361 = vsel %vm359, %v355, 0
    %v364 = vsel %vm359, %v356, 0
    %v367 = vsel %vm359, %v357, 0
    %v370 = vsel %vm359, %v358, 0
    %372 = vmatprep.subr.bf16.mxu0 0
    %373 = vmatpush1.bf16.msra.mxu0 %v281
    %374 = vmatprep.subr.bf16.mxu0 0
    %375 = vmatpush1.bf16.msra.mxu0 %v282
    %376 = vmatprep.subr.bf16.mxu0 0
    %377 = vmatpush1.bf16.msra.mxu0 0
    %378 = vmatprep.subr.bf16.mxu0 0
    %379 = vmatpush1.bf16.msra.mxu0 0
    %380 = vmatprep.subr.bf16.mxu0 0
    %381 = vmatpush1.bf16.msra.mxu0 0
    %382 = vmatprep.subr.bf16.mxu0 0
    %383 = vmatpush1.bf16.msra.mxu0 0
    %384 = vmatprep.subr.bf16.mxu0 0
    %385 = vmatpush1.bf16.msra.mxu0 0
    %386 = vmatprep.subr.bf16.mxu0 0
    %387 = vmatpush1.bf16.msra.mxu0 0
    %388 = vmatprep.subr.bf16.mxu0 0
    %389 = vmatpush1.bf16.msra.mxu0 0
    %390 = vmatprep.subr.bf16.mxu0 0
    %391 = vmatpush1.bf16.msra.mxu0 0
    %392 = vmatprep.subr.bf16.mxu0 0
    %393 = vmatpush1.bf16.msra.mxu0 0
    %394 = vmatprep.subr.bf16.mxu0 0
    %395 = vmatpush1.bf16.msra.mxu0 0
    %396 = vmatprep.subr.bf16.mxu0 0
    %397 = vmatpush1.bf16.msra.mxu0 0
    %398 = vmatprep.subr.bf16.mxu0 0
    %399 = vmatpush1.bf16.msra.mxu0 0
    %400 = vmatprep.subr.bf16.mxu0 0
    %401 = vmatpush1.bf16.msra.mxu0 0
    %402 = vmatprep.subr.bf16.mxu0 0
    %403 = vmatpush1.bf16.msra.mxu0 0
    %404 = vmatprep.mubr.bf16.mxu0 0
    %405 = vmatmul.mubr.bf16.gmra.mrb[0].mxu0 %v361
    %v406 = vpop.f32.mrb[0].mxu0
    %v407 = vadd.f32 %v302, %v406
    %v408 = vpop.f32.mrb[0].mxu0
    %v409 = vpop.f32.mrb[0].mxu0
    %v410 = vadd.f32 %v307, %v409
    %v411 = vpop.f32.mrb[0].mxu0
    %412 = vmatprep.mubr.bf16.mxu0 0
    %413 = vmatmul.mubr.bf16.gmra.mrb[0].mxu0 %v364
    %v414 = vpop.f32.mrb[0].mxu0
    %v415 = vadd.f32 %v312, %v414
    %v416 = vpop.f32.mrb[0].mxu0
    %v417 = vpop.f32.mrb[0].mxu0
    %v418 = vadd.f32 %v317, %v417
    %v419 = vpop.f32.mrb[0].mxu0
    %420 = vmatprep.mubr.bf16.mxu0 0
    %421 = vmatmul.mubr.bf16.gmra.mrb[0].mxu0 %v367
    %v422 = vpop.f32.mrb[0].mxu0
    %v423 = vadd.f32 %v322, %v422
    %v424 = vpop.f32.mrb[0].mxu0
    %v425 = vpop.f32.mrb[0].mxu0
    %v426 = vadd.f32 %v327, %v425
    %v427 = vpop.f32.mrb[0].mxu0
    %428 = vmatprep.mubr.bf16.mxu0 0
    %429 = vmatmul.mubr.bf16.gmra.mrb[0].mxu0 %v370
    %v430 = vpop.f32.mrb[0].mxu0
    %v431 = vadd.f32 %v332, %v430
    %v432 = vpop.f32.mrb[0].mxu0
    %v433 = vpop.f32.mrb[0].mxu0
    %v434 = vadd.f32 %v337, %v433
    %v435 = vpop.f32.mrb[0].mxu0
    %436 = vdwg.mxu0
    %v437 = vmax.f32 %v407, 0.0
    %v438 = vmax.f32 %v410, 0.0
    %v439 = vmax.f32 %v415, 0.0
    %v440 = vmax.f32 %v418, 0.0
    %v441 = vmax.f32 %v423, 0.0
    %v442 = vmax.f32 %v426, 0.0
    %v443 = vmax.f32 %v431, 0.0
    %v444 = vmax.f32 %v434, 0.0
    %v445 = vpack.c.bf16 %v438, %v437
    %v446 = vpack.c.bf16 %v440, %v439
    %v447 = vpack.c.bf16 %v442, %v441
    %v448 = vpack.c.bf16 %v444, %v443
    %v449 = vld [vmem:[%s5] sm:$0xf]
    %v450 = vld [vmem:[%s5 + $0x4] sm:$0xf]
    %v451 = vld [vmem:[%s5 + $0x8] sm:$0xf]
    %v452 = vld [vmem:[%s5 + $0xc] sm:$0xf]
    %v453 = vld [vmem:[%s6] sm:$0xff]
    %v454 = vld [vmem:[%s6 + $0x8] sm:$0xff]
    %v455 = vld [vmem:[%s6 + $0x10] sm:$0xff]
    %v456 = vld [vmem:[%s6 + $0x18] sm:$0xff]
    %458 = vset.pattern.permute.xlu0 0
    %459 = vperm.xlu0 %458, %v453
    %v460 = vpop.permute.xlu0 %459
    %463 = vset.pattern.permute.xlu0 0
    %464 = vperm.xlu0 %463, %v454
    %v465 = vpop.permute.xlu0 %464
    %468 = vset.pattern.permute.xlu0 0
    %469 = vperm.xlu0 %468, %v455
    %v470 = vpop.permute.xlu0 %469
    %473 = vset.pattern.permute.xlu0 0
    %474 = vperm.xlu0 %473, %v456
    %v475 = vpop.permute.xlu0 %474
    %v481 = vunpack.c.l.b16 %v449
    %v482 = vunpack.c.l.b16 %v450
    %v483 = vunpack.c.l.b16 %v451
    %v484 = vunpack.c.l.b16 %v452
    %v485 = vpack.c.b16 %v482, %v481
    %v486 = vpack.c.b16 %v484, %v483
    %vm487 = vcmask 523264
    %v489 = vsel %vm487, %v485, 0
    %v492 = vsel %vm487, %v486, 0
    %494 = vmatprep.subr.bf16.mxu0 0
    %495 = vmatpush1.bf16.msra.mxu0 %v445
    %496 = vmatprep.subr.bf16.mxu0 0
    %497 = vmatpush1.bf16.msra.mxu0 %v446
    %498 = vmatprep.subr.bf16.mxu0 0
    %499 = vmatpush1.bf16.msra.mxu0 %v447
    %500 = vmatprep.subr.bf16.mxu0 0
    %501 = vmatpush1.bf16.msra.mxu0 %v448
    %502 = vmatprep.subr.bf16.mxu0 0
    %503 = vmatpush1.bf16.msra.mxu0 0
    %504 = vmatprep.subr.bf16.mxu0 0
    %505 = vmatpush1.bf16.msra.mxu0 0
    %506 = vmatprep.subr.bf16.mxu0 0
    %507 = vmatpush1.bf16.msra.mxu0 0
    %508 = vmatprep.subr.bf16.mxu0 0
    %509 = vmatpush1.bf16.msra.mxu0 0
    %510 = vmatprep.subr.bf16.mxu0 0
    %511 = vmatpush1.bf16.msra.mxu0 0
    %512 = vmatprep.subr.bf16.mxu0 0
    %513 = vmatpush1.bf16.msra.mxu0 0
    %514 = vmatprep.subr.bf16.mxu0 0
    %515 = vmatpush1.bf16.msra.mxu0 0
    %516 = vmatprep.subr.bf16.mxu0 0
    %517 = vmatpush1.bf16.msra.mxu0 0
    %518 = vmatprep.subr.bf16.mxu0 0
    %519 = vmatpush1.bf16.msra.mxu0 0
    %520 = vmatprep.subr.bf16.mxu0 0
    %521 = vmatpush1.bf16.msra.mxu0 0
    %522 = vmatprep.subr.bf16.mxu0 0
    %523 = vmatpush1.bf16.msra.mxu0 0
    %524 = vmatprep.subr.bf16.mxu0 0
    %525 = vmatpush1.bf16.msra.mxu0 0
    %526 = vmatprep.mubr.bf16.mxu0 0
    %527 = vmatmul.mubr.bf16.gmra.mrb[0].mxu0 %v489
    %v528 = vpop.f32.mrb[0].mxu0
    %v529 = vadd.f32 %v460, %v528
    %v530 = vpop.f32.mrb[0].mxu0
    %v531 = vpop.f32.mrb[0].mxu0
    %v532 = vadd.f32 %v465, %v531
    %v533 = vpop.f32.mrb[0].mxu0
    %534 = vmatprep.mubr.bf16.mxu0 0
    %535 = vmatmul.mubr.bf16.gmra.mrb[0].mxu0 %v492
    %v536 = vpop.f32.mrb[0].mxu0
    %v537 = vadd.f32 %v470, %v536
    %v538 = vpop.f32.mrb[0].mxu0
    %v539 = vpop.f32.mrb[0].mxu0
    %v540 = vadd.f32 %v475, %v539
    %v541 = vpop.f32.mrb[0].mxu0
    %542 = vdwg.mxu0
    %v543 = vmax.f32 %v529, 0.0
    %v544 = vmax.f32 %v532, 0.0
    %v545 = vmax.f32 %v537, 0.0
    %v546 = vmax.f32 %v540, 0.0
    %v547 = vld [vmem:[%s7] sm:$0xff]
    %v548 = vld [vmem:[%s7 + $0x8] sm:$0xff]
    %v549 = vld [vmem:[%s7 + $0x10] sm:$0xff]
    %v550 = vld [vmem:[%s7 + $0x18] sm:$0xff]
    %552 = vset.pattern.permute.xlu0 0
    %553 = vperm.xlu0 %552, %v547
    %v554 = vpop.permute.xlu0 %553
    %557 = vset.pattern.permute.xlu0 0
    %558 = vperm.xlu0 %557, %v548
    %v559 = vpop.permute.xlu0 %558
    %562 = vset.pattern.permute.xlu0 0
    %563 = vperm.xlu0 %562, %v549
    %v564 = vpop.permute.xlu0 %563
    %567 = vset.pattern.permute.xlu0 0
    %568 = vperm.xlu0 %567, %v550
    %v569 = vpop.permute.xlu0 %568
    %v571 = vmul.f32 %v543, %v554
    %v572 = vmul.f32 %v544, %v559
    %v573 = vmul.f32 %v545, %v564
    %v574 = vmul.f32 %v546, %v569
    %v575 = vadd.f32 %v571, %v572
    %v576 = vadd.f32 %v575, %v573
    %v577 = vadd.f32 %v576, %v574
    %v578 = vrot.slane %v577, 4
    %v579 = vadd.f32 %v577, %v578
    %v580 = vrot.slane %v579, 2
    %v581 = vadd.f32 %v579, %v580
    %v582 = vrot.slane %v581, 1
    %v583 = vadd.f32 %v581, %v582
    %v584 = vld [vmem:[#allocation2] sm:$0x1]
    %586 = vset.pattern.permute.xlu0 0
    %587 = vperm.xlu0 %586, %v584
    %v588 = vpop.permute.xlu0 %587
    %v590 = vlaneseq
    %v591 = vshrl.u32 %v590, 7
    %v592 = vsub.s32 0, %v591
    %v593 = vrot.slane %v588, %v592
    %v594 = vadd.f32 %v583, %v593
    %v595 = vadd.f32 %v594, %v276
    %v596 = vxor.u32 %v595, 2147483648
    %v597 = vmul.f32 %v596, 1.442695
    %v598 = vpow.pop %v597
    %v599 = vadd.f32 %v598, 1.0
    %v600 = vrcp.pop %v599
    %v601 = vmul.f32 1.0, %v600
    %602 = vst [vmem:[#allocation3] sm:$0x1] %v601
    // Predicated region
    $region38: #{tpu_custom_call.1} parent=1 // pred_check
      _
    $region39: #{tpu_custom_call.1} parent=1 // pred_check_branch
      %604 = sbr.rel (0) target = $region41
    $region40: #{tpu_custom_call.1} parent=1 // pred_region
      %s606 = ssub.s32 16, 16
      %607 = vsyncadd [#allocation4], %s606
      %s609 = sshll.u32 [#allocation3], 4
      %s610 = int_to_ptr.vmem [resolvable:$true] %s609
      %612 = dma.vmem_to_hbm [thread:$0]  %s610, 16, %s9, [#allocation4]
    $region41: #{tpu_custom_call.1} parent=1 // pred_fallthru
      _
    // Predicated region
    $region42: #{tpu_custom_call.1} parent=1 // pred_check
      _
    $region43: #{tpu_custom_call.1} parent=1 // pred_check_branch
      %614 = sbr.rel (0) target = $region45
    $region44: #{tpu_custom_call.1} parent=1 // pred_region
      %615 = dma.done [#allocation4], 16
    $region45: #{tpu_custom_call.1} parent=1 // pred_fallthru
      _
    %616 = vsyncpa [#allocation4], 1

</llo_original>
